<compile_context>
chip_gen: v6e
topology: v6e:2x2x1
jax: 0.10.0
libtpu: 0.0.40
codegen_flags: <defaults>
</compile_context>

<pallas_src>
import jax
import jax.numpy as jnp
from jax.experimental import pallas as pl
from jax.experimental.pallas import tpu as pltpu

_IN = 10
_HID = 5
_OUT = 2


def _mlp_kernel(x_ref, w1_ref, b1_ref, w2_ref, b2_ref, o_ref):
    # fc1: (TB, 10) @ (10, 5), f32 accumulation on the MXU.
    h = jnp.dot(x_ref[...], w1_ref[...], preferred_element_type=jnp.float32)
    h = h + b1_ref[...]
    h = jnp.maximum(h, 0.0)  # ReLU (VPU)

    # fc2: (TB, 5) @ (5, 2), f32 accumulation.
    logits = jnp.dot(h.astype(w2_ref.dtype), w2_ref[...],
                     preferred_element_type=jnp.float32)
    logits = logits + b2_ref[...]

    # 2-class softmax == sigmoid of the logit difference.
    # Avoids cross-lane max/sum reductions (XLU) and halves EUP exp work;
    # numerically identical to softmax for 2 classes.
    d = logits[:, 1:2] - logits[:, 0:1]
    p1 = pl.reciprocal(1.0 + jnp.exp(-d), approx=False)
    p0 = 1.0 - p1
    o_ref[...] = jnp.concatenate([p0, p1], axis=1).astype(o_ref.dtype)


def binary_classifier_forward(x, w1, b1, w2, b2, *, block_b=1024,
                              use_bf16_inputs=False):
    """x: (B, 10) -> (B, 2) softmax probabilities (float32)."""
    B = x.shape[0]

    if use_bf16_inputs:
        x = x.astype(jnp.bfloat16)
        w1 = w1.astype(jnp.bfloat16)
        w2 = w2.astype(jnp.bfloat16)

    # Biases as (1, N) 2-D arrays; kept in f32 (all elementwise math is f32).
    b1_2d = b1.reshape(1, _HID).astype(jnp.float32)
    b2_2d = b2.reshape(1, _OUT).astype(jnp.float32)

    # Batch tile: multiple of 8 sublanes. Lane-padded VMEM footprint per buffer is
    # TB*128*4 B for x and for out, so TB=1024 (~0.5 MiB each) is comfortably
    # inside the 32 MiB default scoped VMEM even on v7x with double buffering.
    tb = min(block_b, max(8, ((B + 7) // 8) * 8))
    grid = (pl.cdiv(B, tb),)

    def resident(arr):
        # Full-shape block, same block index every grid step -> stays in VMEM.
        return pl.BlockSpec(arr.shape, lambda i: (0,) * arr.ndim)

    itemsize = jnp.dtype(x.dtype).itemsize
    flops = 2 * B * (_IN * _HID + _HID * _OUT)
    bytes_accessed = (B * _IN * itemsize                      # read x
                      + B * _OUT * 4                          # write out
                      + (_IN * _HID + _HID * _OUT) * itemsize # weights
                      + (_HID + _OUT) * 4)                    # biases

    return pl.pallas_call(
        _mlp_kernel,
        out_shape=jax.ShapeDtypeStruct((B, _OUT), jnp.float32),
        grid=grid,
        in_specs=[
            pl.BlockSpec((tb, _IN), lambda i: (i, 0)),   # pipelined batch tiles of x
            resident(w1),
            resident(b1_2d),
            resident(w2),
            resident(b2_2d),
        ],
        out_specs=pl.BlockSpec((tb, _OUT), lambda i: (i, 0)),
        compiler_params=pltpu.CompilerParams(
            dimension_semantics=("parallel",),           # megacore sharding on v7x
            vmem_limit_bytes=32 * 1024 * 1024,
        ),
        cost_estimate=pl.CostEstimate(
            flops=flops, transcendentals=B, bytes_accessed=bytes_accessed),
    )(x, w1, b1_2d, w2, b2_2d)


def _ref_forward(x, w1, b1, w2, b2):
    h = jnp.maximum(x @ w1 + b1, 0.0)
    logits = h @ w2 + b2
    return jax.nn.softmax(logits, axis=1)


if __name__ == "__main__":
    key = jax.random.PRNGKey(0)
    kx, k1, k2, k3, k4 = jax.random.split(key, 5)

    B = 8
    x = jax.random.normal(kx, (B, _IN), dtype=jnp.float32)

    # Deterministic parameter init (uniform, akin to torch Linear default scale).
    w1 = jax.random.uniform(k1, (_IN, _HID), jnp.float32, -0.3, 0.3)
    b1 = jax.random.uniform(k2, (_HID,), jnp.float32, -0.3, 0.3)
    w2 = jax.random.uniform(k3, (_HID, _OUT), jnp.float32, -0.4, 0.4)
    b2 = jax.random.uniform(k4, (_OUT,), jnp.float32, -0.4, 0.4)

    ref = _ref_forward(x, w1, b1, w2, b2)

    # f32 path: bit-for-bit semantics of the PyTorch module.
    out = jax.block_until_ready(binary_classifier_forward(x, w1, b1, w2, b2))
    assert out.shape == (B, _OUT)
    assert jnp.allclose(out, ref, atol=1e-5, rtol=1e-5), "mismatch vs reference"
    assert jnp.allclose(jnp.sum(out, axis=1), 1.0, atol=1e-5), "rows must sum to 1"

    # bf16-input fast path (halves the dominant HBM stream); looser tolerance.
    out_bf16 = jax.block_until_ready(
        binary_classifier_forward(x, w1, b1, w2, b2, use_bf16_inputs=True))
    assert jnp.allclose(out_bf16, ref, atol=2e-2, rtol=2e-2), "bf16 path mismatch"
    assert jnp.allclose(jnp.sum(out_bf16, axis=1), 1.0, atol=1e-3)

    print("KERNEL_OK")
</pallas_src>

<mosaic_0001>
module attributes {stable_mosaic.version = 11 : i64} {
  func.func @_mlp_kernel(%arg0: i32, %arg1: memref<8x10xf32, #tpu.memory_space<vmem>>, %arg2: memref<10x5xf32, #tpu.memory_space<vmem>>, %arg3: memref<1x5xf32, #tpu.memory_space<vmem>>, %arg4: memref<5x2xf32, #tpu.memory_space<vmem>>, %arg5: memref<1x2xf32, #tpu.memory_space<vmem>>, %arg6: memref<8x2xf32, #tpu.memory_space<vmem>>) attributes {dimension_semantics = [#tpu.dimension_semantics<parallel>], iteration_bounds = array<i64: 1>, scalar_prefetch = 0 : i64, scratch_operands = 0 : i64, tpu.core_type = #tpu.core_type<tc>, window_params = [{transform_indices = @transform_0, window_bounds = array<i64: 8, 10>}, {pipeline_mode = #tpu.pipeline_mode<synchronous>, transform_indices = @transform_1, window_bounds = array<i64: 10, 5>}, {pipeline_mode = #tpu.pipeline_mode<synchronous>, transform_indices = @transform_2, window_bounds = array<i64: 1, 5>}, {pipeline_mode = #tpu.pipeline_mode<synchronous>, transform_indices = @transform_3, window_bounds = array<i64: 5, 2>}, {pipeline_mode = #tpu.pipeline_mode<synchronous>, transform_indices = @transform_4, window_bounds = array<i64: 1, 2>}, {transform_indices = @transform_5, window_bounds = array<i64: 8, 2>}]} {
    %c0 = arith.constant 0 : index
    %c0_0 = arith.constant 0 : index
    %0 = vector.load %arg1[%c0, %c0_0] : memref<8x10xf32, #tpu.memory_space<vmem>>, vector<8x10xf32>
    %c0_1 = arith.constant 0 : index
    %c0_2 = arith.constant 0 : index
    %1 = vector.load %arg2[%c0_1, %c0_2] : memref<10x5xf32, #tpu.memory_space<vmem>>, vector<10x5xf32>
    %cst = arith.constant dense<0.000000e+00> : vector<8x5xf32>
    %2 = tpu.matmul %0, %1, %cst {dimension_numbers = #tpu.dot_dimension_numbers<[1], [0], [0], [1], [0, 0, 1, 1], [], []>} : vector<8x10xf32>, vector<10x5xf32>, vector<8x5xf32> -> vector<8x5xf32>
    %c0_3 = arith.constant 0 : index
    %c0_4 = arith.constant 0 : index
    %3 = vector.load %arg3[%c0_3, %c0_4] : memref<1x5xf32, #tpu.memory_space<vmem>>, vector<1x5xf32>
    %4 = vector.broadcast %3 : vector<1x5xf32> to vector<8x5xf32>
    %5 = arith.addf %2, %4 : vector<8x5xf32>
    %cst_5 = arith.constant 0.000000e+00 : f32
    %6 = vector.broadcast %cst_5 : f32 to vector<8x5xf32>
    %7 = arith.maximumf %5, %6 : vector<8x5xf32>
    %c0_6 = arith.constant 0 : index
    %c0_7 = arith.constant 0 : index
    %8 = vector.load %arg4[%c0_6, %c0_7] : memref<5x2xf32, #tpu.memory_space<vmem>>, vector<5x2xf32>
    %cst_8 = arith.constant dense<0.000000e+00> : vector<8x2xf32>
    %9 = tpu.matmul %7, %8, %cst_8 {dimension_numbers = #tpu.dot_dimension_numbers<[1], [0], [0], [1], [0, 0, 1, 1], [], []>} : vector<8x5xf32>, vector<5x2xf32>, vector<8x2xf32> -> vector<8x2xf32>
    %c0_9 = arith.constant 0 : index
    %c0_10 = arith.constant 0 : index
    %10 = vector.load %arg5[%c0_9, %c0_10] : memref<1x2xf32, #tpu.memory_space<vmem>>, vector<1x2xf32>
    %11 = vector.broadcast %10 : vector<1x2xf32> to vector<8x2xf32>
    %12 = arith.addf %9, %11 : vector<8x2xf32>
    %13 = vector.extract_strided_slice %12 {offsets = [0, 1], sizes = [8, 1], strides = [1, 1]} : vector<8x2xf32> to vector<8x1xf32>
    %14 = vector.extract_strided_slice %12 {offsets = [0, 0], sizes = [8, 1], strides = [1, 1]} : vector<8x2xf32> to vector<8x1xf32>
    %15 = arith.subf %13, %14 : vector<8x1xf32>
    %cst_11 = arith.constant 0.000000e+00 : f32
    %16 = vector.broadcast %cst_11 : f32 to vector<8x1xf32>
    %17 = arith.subf %16, %15 : vector<8x1xf32>
    %18 = math.exp %17 : vector<8x1xf32>
    %cst_12 = arith.constant 1.000000e+00 : f32
    %19 = vector.broadcast %cst_12 : f32 to vector<8x1xf32>
    %20 = arith.addf %19, %18 : vector<8x1xf32>
    %21 = tpu.reciprocal %20 : vector<8x1xf32> -> vector<8x1xf32>
    %cst_13 = arith.constant 1.000000e+00 : f32
    %22 = vector.broadcast %cst_13 : f32 to vector<8x1xf32>
    %23 = arith.subf %22, %21 : vector<8x1xf32>
    %24 = tpu.concatenate %23, %21 in 1 : vector<8x1xf32>, vector<8x1xf32> -> vector<8x2xf32>
    %c0_14 = arith.constant 0 : index
    %c0_15 = arith.constant 0 : index
    %25 = vector.load %arg6[%c0_14, %c0_15] : memref<8x2xf32, #tpu.memory_space<vmem>>, vector<8x2xf32>
    tpu.vector_store %arg6[%c0_14, %c0_15], %24 {strides = array<i32>} : memref<8x2xf32, #tpu.memory_space<vmem>>, vector<8x2xf32>,
    return
  }
  func.func @transform_0(%arg0: i32) -> (i32, i32) {
    %c0_i32 = arith.constant 0 : i32
    %c0_i32_0 = arith.constant 0 : i32
    return %arg0, %c0_i32 : i32, i32
  }
  func.func @transform_1(%arg0: i32) -> (i32, i32) {
    %c0_i32 = arith.constant 0 : i32
    %c0_i32_0 = arith.constant 0 : i32
    %c0_i32_1 = arith.constant 0 : i32
    return %c0_i32, %c0_i32_0 : i32, i32
  }
  func.func @transform_2(%arg0: i32) -> (i32, i32) {
    %c0_i32 = arith.constant 0 : i32
    %c0_i32_0 = arith.constant 0 : i32
    %c0_i32_1 = arith.constant 0 : i32
    return %c0_i32, %c0_i32_0 : i32, i32
  }
  func.func @transform_3(%arg0: i32) -> (i32, i32) {
    %c0_i32 = arith.constant 0 : i32
    %c0_i32_0 = arith.constant 0 : i32
    %c0_i32_1 = arith.constant 0 : i32
    return %c0_i32, %c0_i32_0 : i32, i32
  }
  func.func @transform_4(%arg0: i32) -> (i32, i32) {
    %c0_i32 = arith.constant 0 : i32
    %c0_i32_0 = arith.constant 0 : i32
    %c0_i32_1 = arith.constant 0 : i32
    return %c0_i32, %c0_i32_0 : i32, i32
  }
  func.func @transform_5(%arg0: i32) -> (i32, i32) {
    %c0_i32 = arith.constant 0 : i32
    %c0_i32_0 = arith.constant 0 : i32
    return %arg0, %c0_i32 : i32, i32
  }
}

</mosaic_0001>

<llo_original>
// kernel: tpu_custom_call.1
$region0: #{tpu_custom_call.1}
  #allocation0 [shape = 'u32[]', space=smem, size = 0x4, offset = 0x4, fixed_abs, tag = 'smem constant byte address 0x4 - core index']
  #allocation1 [shape = 'u32[144,128]{1,0:T(1,128)}', space=vmem, size = 0x12000, scoped, tag = 'internal scratch']
  %s0 = inlined_call_operand.vmem [shape: f32[8,10], index: 0, kind: input, shape index: {}]
  %s1 = inlined_call_operand.vmem [shape: f32[10,5], index: 1, kind: input, shape index: {}]
  %s2 = inlined_call_operand.vmem [shape: f32[1,5], index: 2, kind: input, shape index: {}]
  %s3 = inlined_call_operand.vmem [shape: f32[5,2], index: 3, kind: input, shape index: {}]
  %s4 = inlined_call_operand.vmem [shape: f32[1,2], index: 4, kind: input, shape index: {}]
  %s5 = inlined_call_operand.vmem [shape: f32[8,2], index: 5, kind: output, shape index: {}]
  %s6 = sld [smem:[#allocation0]]
  $region30: #{tpu_custom_call.1} parent=0
    _
  %s8 = ssub.s32 1, %s6
  %s9 = scalar_select 0, %s8, %s6
  // Predicated region
  $region2: #{tpu_custom_call.1} parent=0 // pred_check
    _
  $region3: #{tpu_custom_call.1} parent=0 // pred_check_branch
    %11 = sbr.rel (0) target = $region5
  $region4: #{tpu_custom_call.1} parent=0 // pred_region
    _
  $region5: #{tpu_custom_call.1} parent=0 // pred_fallthru
    _
  // Predicated region
  $region6: #{tpu_custom_call.1} parent=0 // pred_check
    _
  $region7: #{tpu_custom_call.1} parent=0 // pred_check_branch
    %13 = sbr.rel (0) target = $region9
  $region8: #{tpu_custom_call.1} parent=0 // pred_region
    _
  $region9: #{tpu_custom_call.1} parent=0 // pred_fallthru
    _
  // Predicated region
  $region10: #{tpu_custom_call.1} parent=0 // pred_check
    _
  $region11: #{tpu_custom_call.1} parent=0 // pred_check_branch
    %15 = sbr.rel (0) target = $region13
  $region12: #{tpu_custom_call.1} parent=0 // pred_region
    _
  $region13: #{tpu_custom_call.1} parent=0 // pred_fallthru
    _
  // Predicated region
  $region14: #{tpu_custom_call.1} parent=0 // pred_check
    _
  $region15: #{tpu_custom_call.1} parent=0 // pred_check_branch
    %17 = sbr.rel (0) target = $region17
  $region16: #{tpu_custom_call.1} parent=0 // pred_region
    _
  $region17: #{tpu_custom_call.1} parent=0 // pred_fallthru
    _
  // Predicated region
  $region18: #{tpu_custom_call.1} parent=0 // pred_check
    _
  $region19: #{tpu_custom_call.1} parent=0 // pred_check_branch
    %19 = sbr.rel (0) target = $region21
  $region20: #{tpu_custom_call.1} parent=0 // pred_region
    _
  $region21: #{tpu_custom_call.1} parent=0 // pred_fallthru
    _
  %v20 = vld [vmem:[%s0] sm:$0xff]
  %v21 = vld [vmem:[%s1] sm:$0xff]
  %v22 = vld [vmem:[%s1 + $0x8] sm:$0x3]
  %v23 = vld [vmem:[%s2] sm:$0x1]
  %v25 = vlaneseq
  %v26 = vshrl.u32 %v25, 7
  %v27 = vsub.s32 0, %v26
  %v28 = vrot.slane %v23, %v27
  %vm30 = vcmask 80896
  %v32 = vsel %vm30, %v20, 0
  %vm34 = vcmask 1041408
  %v36 = vsel %vm34, %v22, 0
  %38 = vmatprep.subr.mxu0 0.0
  %39 = vmatpush1.msra.mxu0 0.0
  %40 = vmatprep.subr.mxu0 0.0
  %41 = vmatpush1.msra.mxu0 0.0
  %42 = vmatprep.subr.mxu0 0.0
  %43 = vmatpush1.msra.mxu0 0.0
  %44 = vmatprep.subr.mxu0 0.0
  %45 = vmatpush1.msra.mxu0 0.0
  %46 = vmatprep.subr.mxu0 0.0
  %47 = vmatpush1.msra.mxu0 0.0
  %48 = vmatprep.subr.mxu0 0.0
  %49 = vmatpush1.msra.mxu0 0.0
  %50 = vmatprep.subr.mxu0 0.0
  %51 = vmatpush1.msra.mxu0 0.0
  %52 = vmatprep.subr.mxu0 0.0
  %53 = vmatpush1.msra.mxu0 0.0
  %54 = vmatprep.subr.mxu0 0.0
  %55 = vmatpush1.msra.mxu0 0.0
  %56 = vmatprep.subr.mxu0 0.0
  %57 = vmatpush1.msra.mxu0 0.0
  %58 = vmatprep.subr.mxu0 0.0
  %59 = vmatpush1.msra.mxu0 0.0
  %60 = vmatprep.subr.mxu0 0.0
  %61 = vmatpush1.msra.mxu0 0.0
  %62 = vmatprep.subr.mxu0 0.0
  %63 = vmatpush1.msra.mxu0 0.0
  %64 = vmatprep.subr.mxu0 0.0
  %65 = vmatpush1.msra.mxu0 0.0
  %66 = vmatprep.subr.mxu0 0.0
  %67 = vmatpush1.msra.mxu0 %v36
  %68 = vmatprep.subr.mxu0 0.0
  %69 = vmatpush1.msra.mxu0 %v21
  %70 = vmatprep.subr.mxu0 0.0
  %71 = vmatpush2.msra.mxu0 0.0
  %72 = vmatprep.subr.mxu0 0.0
  %73 = vmatpush2.msra.mxu0 0.0
  %74 = vmatprep.subr.mxu0 0.0
  %75 = vmatpush2.msra.mxu0 0.0
  %76 = vmatprep.subr.mxu0 0.0
  %77 = vmatpush2.msra.mxu0 0.0
  %78 = vmatprep.subr.mxu0 0.0
  %79 = vmatpush2.msra.mxu0 0.0
  %80 = vmatprep.subr.mxu0 0.0
  %81 = vmatpush2.msra.mxu0 0.0
  %82 = vmatprep.subr.mxu0 0.0
  %83 = vmatpush2.msra.mxu0 0.0
  %84 = vmatprep.subr.mxu0 0.0
  %85 = vmatpush2.msra.mxu0 0.0
  %86 = vmatprep.subr.mxu0 0.0
  %87 = vmatpush2.msra.mxu0 0.0
  %88 = vmatprep.subr.mxu0 0.0
  %89 = vmatpush2.msra.mxu0 0.0
  %90 = vmatprep.subr.mxu0 0.0
  %91 = vmatpush2.msra.mxu0 0.0
  %92 = vmatprep.subr.mxu0 0.0
  %93 = vmatpush2.msra.mxu0 0.0
  %94 = vmatprep.subr.mxu0 0.0
  %95 = vmatpush2.msra.mxu0 0.0
  %96 = vmatprep.subr.mxu0 0.0
  %97 = vmatpush2.msra.mxu0 0.0
  %98 = vmatprep.subr.mxu0 0.0
  %99 = vmatpush2.msra.mxu0 0.0
  %100 = vmatprep.subr.mxu0 0.0
  %101 = vmatpush2.msra.mxu0 0.0
  %102 = vmatprep.mubr.f32.mxu0 0.0
  %103 = vmatmul.mubr.f32.gmra.mxu0 %v32
  %v104 = vpop.f32.mrf.mxu0
  %v105 = vadd.f32 %v28, %v104
  %v106 = vpop.f32.mrf.mxu0
  %107 = vdwg.mxu0
  %v108 = vmax.f32 %v105, 0.0
  %v109 = vld [vmem:[%s3] sm:$0x1f]
  %v110 = vld [vmem:[%s4] sm:$0x1]
  %v112 = vlaneseq
  %v113 = vshrl.u32 %v112, 7
  %v114 = vsub.s32 0, %v113
  %v115 = vrot.slane %v110, %v114
  %vm117 = vcmask 39936
  %v119 = vsel %vm117, %v108, 0
  %vm121 = vcmask 1044480
  %v123 = vsel %vm121, %v109, 0
  %125 = vmatprep.subr.mxu0 0.0
  %126 = vmatpush1.msra.mxu0 0.0
  %127 = vmatprep.subr.mxu0 0.0
  %128 = vmatpush1.msra.mxu0 0.0
  %129 = vmatprep.subr.mxu0 0.0
  %130 = vmatpush1.msra.mxu0 0.0
  %131 = vmatprep.subr.mxu0 0.0
  %132 = vmatpush1.msra.mxu0 0.0
  %133 = vmatprep.subr.mxu0 0.0
  %134 = vmatpush1.msra.mxu0 0.0
  %135 = vmatprep.subr.mxu0 0.0
  %136 = vmatpush1.msra.mxu0 0.0
  %137 = vmatprep.subr.mxu0 0.0
  %138 = vmatpush1.msra.mxu0 0.0
  %139 = vmatprep.subr.mxu0 0.0
  %140 = vmatpush1.msra.mxu0 0.0
  %141 = vmatprep.subr.mxu0 0.0
  %142 = vmatpush1.msra.mxu0 0.0
  %143 = vmatprep.subr.mxu0 0.0
  %144 = vmatpush1.msra.mxu0 0.0
  %145 = vmatprep.subr.mxu0 0.0
  %146 = vmatpush1.msra.mxu0 0.0
  %147 = vmatprep.subr.mxu0 0.0
  %148 = vmatpush1.msra.mxu0 0.0
  %149 = vmatprep.subr.mxu0 0.0
  %150 = vmatpush1.msra.mxu0 0.0
  %151 = vmatprep.subr.mxu0 0.0
  %152 = vmatpush1.msra.mxu0 0.0
  %153 = vmatprep.subr.mxu0 0.0
  %154 = vmatpush1.msra.mxu0 0.0
  %155 = vmatprep.subr.mxu0 0.0
  %156 = vmatpush1.msra.mxu0 %v123
  %157 = vmatprep.subr.mxu0 0.0
  %158 = vmatpush2.msra.mxu0 0.0
  %159 = vmatprep.subr.mxu0 0.0
  %160 = vmatpush2.msra.mxu0 0.0
  %161 = vmatprep.subr.mxu0 0.0
  %162 = vmatpush2.msra.mxu0 0.0
  %163 = vmatprep.subr.mxu0 0.0
  %164 = vmatpush2.msra.mxu0 0.0
  %165 = vmatprep.subr.mxu0 0.0
  %166 = vmatpush2.msra.mxu0 0.0
  %167 = vmatprep.subr.mxu0 0.0
  %168 = vmatpush2.msra.mxu0 0.0
  %169 = vmatprep.subr.mxu0 0.0
  %170 = vmatpush2.msra.mxu0 0.0
  %171 = vmatprep.subr.mxu0 0.0
  %172 = vmatpush2.msra.mxu0 0.0
  %173 = vmatprep.subr.mxu0 0.0
  %174 = vmatpush2.msra.mxu0 0.0
  %175 = vmatprep.subr.mxu0 0.0
  %176 = vmatpush2.msra.mxu0 0.0
  %177 = vmatprep.subr.mxu0 0.0
  %178 = vmatpush2.msra.mxu0 0.0
  %179 = vmatprep.subr.mxu0 0.0
  %180 = vmatpush2.msra.mxu0 0.0
  %181 = vmatprep.subr.mxu0 0.0
  %182 = vmatpush2.msra.mxu0 0.0
  %183 = vmatprep.subr.mxu0 0.0
  %184 = vmatpush2.msra.mxu0 0.0
  %185 = vmatprep.subr.mxu0 0.0
  %186 = vmatpush2.msra.mxu0 0.0
  %187 = vmatprep.subr.mxu0 0.0
  %188 = vmatpush2.msra.mxu0 0.0
  %189 = vmatprep.mubr.f32.mxu0 0.0
  %190 = vmatmul.mubr.f32.gmra.mxu0 %v119
  %v191 = vpop.f32.mrf.mxu0
  %v192 = vadd.f32 %v115, %v191
  %v193 = vpop.f32.mrf.mxu0
  %194 = vdwg.mxu0
  %196 = vrot.lane.b32.xlu0 %v192, 1
  %v197 = vpop.permute.xlu0 %196
  %v199 = vsub.f32 %v192, %v197
  %v200 = vsub.f32 0.0, %v199
  %v201 = vmul.f32 %v200, 1.442695
  %v202 = vpow.pop %v201
  %v203 = vadd.f32 %v202, 1.0
  %v204 = vrcp.pop %v203
  %v205 = vsub.f32 1.0, %v204
  %207 = vrot.lane.b32.xlu0 %v205, 127
  %v208 = vpop.permute.xlu0 %207
  %vm210 = vcmask 7168
  %v211 = vsel %vm210, %v208, %v204
  %vm212 = vcmask 15360
  %213 = vst.msk [vmem:[%s5] sm:$0xff] %vm212, %v211
  // Predicated region
  $region22: #{tpu_custom_call.1} parent=0 // pred_check
    _
  $region23: #{tpu_custom_call.1} parent=0 // pred_check_branch
    %215 = sbr.rel (0) target = $region25
  $region24: #{tpu_custom_call.1} parent=0 // pred_region
    _
  $region25: #{tpu_custom_call.1} parent=0 // pred_fallthru
    _
  // Predicated region
  $region26: #{tpu_custom_call.1} parent=0 // pred_check
    _
  $region27: #{tpu_custom_call.1} parent=0 // pred_check_branch
    %217 = sbr.rel (0) target = $region29
  $region28: #{tpu_custom_call.1} parent=0 // pred_region
    _
  $region29: #{tpu_custom_call.1} parent=0 // pred_fallthru
    _

</llo_original>
